<compile_context>
chip_gen: v7x
topology: tpu7x:2x2x1
jax: 0.10.0
libtpu: 0.0.40
codegen_flags: <defaults>
</compile_context>

<pallas_src>
import functools
import math

import jax
import jax.numpy as jnp
from jax.experimental import pallas as pl
from jax.experimental.pallas import tpu as pltpu


def _round_up(x, m):
    return (x + m - 1) // m * m


def _cdiv(a, b):
    return -(-a // b)


def _default_vmem_budget():
    """Per-generation VMEM budget for block sizing (with headroom)."""
    try:
        info = pltpu.get_tpu_info()
        cap = getattr(info, "vmem_capacity_bytes", None)
        if cap:
            return int(cap * 0.7)
    except Exception:
        pass
    # Conservative fallback: stays under v7x's 64 MiB physical VMEM per core.
    return 44 * 1024 * 1024


# --------------------------------------------------------------------------
# Kernels
# --------------------------------------------------------------------------
def _sine_kernel(x_ref, w_ref, b_ref, o_ref, *, omega_0, epilogue_dtype):
    # x_ref: (tm, K), w_ref: (K, tn), b_ref: (1, tn), o_ref: (tm, tn)
    acc = jnp.dot(x_ref[...], w_ref[...], preferred_element_type=jnp.float32)
    z = omega_0 * (acc + b_ref[...])                 # f32 bias add + scale
    if jnp.dtype(epilogue_dtype) != jnp.dtype(jnp.float32):
        z = z.astype(epilogue_dtype)                 # opt-in bf16 epilogue (v6e/v7x)
    o_ref[...] = jnp.sin(z).astype(o_ref.dtype)


def _sine_kernel_ktiled(x_ref, w_ref, b_ref, o_ref, acc_ref, *,
                        omega_0, epilogue_dtype):
    # Grid: (j over N, i over M, k over K); K is the (last) reduction axis.
    k = pl.program_id(2)

    @pl.when(k == 0)
    def _():
        acc_ref[...] = jnp.zeros_like(acc_ref)

    acc_ref[...] += jnp.dot(x_ref[...], w_ref[...],
                            preferred_element_type=jnp.float32)

    @pl.when(k == pl.num_programs(2) - 1)
    def _():
        z = omega_0 * (acc_ref[...] + b_ref[...])
        if jnp.dtype(epilogue_dtype) != jnp.dtype(jnp.float32):
            z = z.astype(epilogue_dtype)
        o_ref[...] = jnp.sin(z).astype(o_ref.dtype)


# --------------------------------------------------------------------------
# Tile selection
# --------------------------------------------------------------------------
def _choose_tiles(M, N, K, in_bytes, out_bytes, budget, tm_max):
    """Returns (tm, tn, tk, k_tiled)."""

    def block_bytes(tm, tn, tk, with_acc):
        b = 2 * tm * tk * in_bytes              # x tile, double-buffered
        b += 2 * tk * tn * in_bytes             # W.T tile
        b += 2 * tm * tn * out_bytes            # output tile
        b += 2 * 8 * _round_up(tn, 128) * 4     # bias tile (padded f32 layout)
        if with_acc:
            b += tm * tn * 4                    # f32 accumulator scratch
        return b

    # N candidates: the full width first (kills x re-reads, drops the N axis),
    # then lane-dense (multiple-of-128) tiles.
    n_cands = [N]
    for t in (512, 256, 128):
        if t < _round_up(N, 128):
            n_cands.append(t)

    # M candidates: largest first (amortizes ~0.35us per grid step), halving.
    m_cands = []
    t = _round_up(min(tm_max, M), 8)
    while True:
        m_cands.append(t)
        if t <= 8:
            break
        t = max(8, _round_up(t // 2, 8))

    # Phase 1: K fully resident in the block (no reduction grid axis).
    for tn in n_cands:
        for tm in m_cands:
            if block_bytes(tm, tn, K, False) <= budget:
                return tm, tn, K, False

    # Phase 2: large in_features (e.g. under v7x's smaller VMEM) -> tile K.
    tk = 512 if K >= 512 else _round_up(K, 128)
    for tn in n_cands:
        for tm in m_cands:
            if block_bytes(tm, tn, tk, True) <= budget:
                return tm, tn, tk, True

    # Last resort: smallest tiles with K tiling.
    return 8, n_cands[-1], tk, True


# --------------------------------------------------------------------------
# Wrapper
# --------------------------------------------------------------------------
_LAST_TILE_DEBUG = {}


def sine_layer(x, weight, bias=None, omega_0=30.0, *,
               compute_dtype=None, out_dtype=None,
               epilogue_dtype=jnp.float32,
               tm_max=1024, vmem_budget_bytes=None,
               weight_transposed=False):
    """SIREN SineLayer forward.

    x:       (..., in_features)
    weight:  (out_features, in_features)  [nn.Linear layout], or
             (in_features, out_features)  if weight_transposed=True
             (hoist the transpose per parameter set when calling repeatedly).
    bias:    (out_features,) or None.
    compute_dtype: dtype x / W are streamed in (None -> x.dtype, exact path).
    out_dtype:     output dtype (None -> x.dtype).  bf16 halves the dominant
                   HBM output stream for hidden layers.
    """
    orig_shape = x.shape
    K = orig_shape[-1]
    if weight_transposed:
        assert weight.shape[0] == K
        N = weight.shape[1]
        w_t = weight
    else:
        assert weight.shape[1] == K
        N = weight.shape[0]
        w_t = weight.T
    if bias is None:
        bias = jnp.zeros((N,), jnp.float32)

    out_dtype = jnp.dtype(out_dtype if out_dtype is not None else x.dtype)
    compute_dtype = jnp.dtype(compute_dtype if compute_dtype is not None else x.dtype)

    x2d = x.reshape(-1, K).astype(compute_dtype)     # (M, K)
    w_t = w_t.astype(compute_dtype)                  # (K, N)
    b2d = bias.reshape(1, N).astype(jnp.float32)     # (1, N) f32 epilogue
    M = x2d.shape[0]

    budget = (vmem_budget_bytes if vmem_budget_bytes is not None
              else _default_vmem_budget())
    in_bytes = compute_dtype.itemsize
    out_bytes = out_dtype.itemsize

    tm, tn, tk, k_tiled = _choose_tiles(M, N, K, in_bytes, out_bytes,
                                        budget, tm_max)
    n_steps = _cdiv(N, tn)
    m_steps = _cdiv(M, tm)

    # v7x has 2 TensorCores per chip: never collapse the parallel grid to a
    # single step when there is enough work to split.
    if n_steps * m_steps == 1 and M >= 16:
        tm = _round_up(_cdiv(M, 2), 8)
        m_steps = _cdiv(M, tm)

    vmem_limit = int(max(budget, 32 * 1024 * 1024))
    kern_kwargs = dict(omega_0=float(omega_0), epilogue_dtype=epilogue_dtype)

    if not k_tiled:
        grid = (n_steps, m_steps)   # j (N) outer, i (M) inner: weight stationary
        kernel = functools.partial(_sine_kernel, **kern_kwargs)
        in_specs = [
            pl.BlockSpec((tm, K), lambda j, i: (i, 0)),     # x row tile
            pl.BlockSpec((K, tn), lambda j, i: (0, j)),     # weight col tile
            pl.BlockSpec((1, tn), lambda j, i: (0, j)),     # bias tile
        ]
        out_spec = pl.BlockSpec((tm, tn), lambda j, i: (i, j))
        scratch = []
        semantics = ("parallel", "parallel")
    else:
        # Zero-pad K so masked edge blocks contribute nothing to the sum.
        K_pad = _round_up(K, tk)
        if K_pad != K:
            x2d = jnp.pad(x2d, ((0, 0), (0, K_pad - K)))
            w_t = jnp.pad(w_t, ((0, K_pad - K), (0, 0)))
        k_steps = K_pad // tk
        grid = (n_steps, m_steps, k_steps)
        kernel = functools.partial(_sine_kernel_ktiled, **kern_kwargs)
        in_specs = [
            pl.BlockSpec((tm, tk), lambda j, i, k: (i, k)),
            pl.BlockSpec((tk, tn), lambda j, i, k: (k, j)),
            pl.BlockSpec((1, tn), lambda j, i, k: (0, j)),
        ]
        out_spec = pl.BlockSpec((tm, tn), lambda j, i, k: (i, j))
        scratch = [pltpu.VMEM((tm, tn), jnp.float32)]
        semantics = ("parallel", "parallel", "arbitrary")

    _LAST_TILE_DEBUG.clear()
    _LAST_TILE_DEBUG.update(dict(tm=tm, tn=tn, tk=tk, k_tiled=k_tiled, grid=grid))

    out2d = pl.pallas_call(
        kernel,
        out_shape=jax.ShapeDtypeStruct((M, N), out_dtype),
        grid_spec=pltpu.PrefetchScalarGridSpec(
            num_scalar_prefetch=0,
            grid=grid,
            in_specs=in_specs,
            out_specs=out_spec,
            scratch_shapes=scratch,
        ),
        compiler_params=pltpu.CompilerParams(
            dimension_semantics=semantics,
            vmem_limit_bytes=vmem_limit,
        ),
    )(x2d, w_t, b2d)

    return out2d.reshape(*orig_shape[:-1], N)


def init_sine_layer_params(key, in_features, out_features, is_first=False,
                           omega_0=30.0):
    """SIREN init matching SineLayer.init_weights (bias keeps nn.Linear's
    default uniform)."""
    kw, kb = jax.random.split(key)
    if is_first:
        lim = 1.0 / in_features
    else:
        lim = math.sqrt(6.0 / in_features) / omega_0
    weight = jax.random.uniform(kw, (out_features, in_features),
                                dtype=jnp.float32, minval=-lim, maxval=lim)
    blim = 1.0 / math.sqrt(in_features)
    bias = jax.random.uniform(kb, (out_features,),
                              dtype=jnp.float32, minval=-blim, maxval=blim)
    return weight, bias


if __name__ == "__main__":
    key = jax.random.PRNGKey(0)
    k1, k2, k3, k4, k5, k6 = jax.random.split(key, 6)
    omega_0 = 30.0

    # --- Test 1: small, non-aligned shapes (edge-masked M/N blocks, grid split
    # for the 2-TC gate); exact f32 semantics. ---
    batch, seq, in_f, out_f = 2, 37, 32, 48
    x1 = jax.random.uniform(k1, (batch, seq, in_f), jnp.float32, -1.0, 1.0)
    w1, b1 = init_sine_layer_params(k2, in_f, out_f, is_first=True,
                                    omega_0=omega_0)
    ref1 = jnp.sin(omega_0 * (x1 @ w1.T + b1))
    y1 = sine_layer(x1, w1, b1, omega_0=omega_0)
    jax.block_until_ready(y1)
    assert y1.shape == (batch, seq, out_f)
    assert not _LAST_TILE_DEBUG["k_tiled"]
    assert jnp.allclose(y1, ref1, atol=1e-5, rtol=1e-5)

    # --- Test 2: aligned hidden-layer shape; full-N weight block + large row
    # tile; also the opt-in bf16-streaming / bf16-output fast path. ---
    x2 = jax.random.uniform(k3, (4, 256, 256), jnp.float32, -1.0, 1.0)
    w2, b2 = init_sine_layer_params(k4, 256, 256, is_first=False,
                                    omega_0=omega_0)
    ref2 = jnp.sin(omega_0 * (x2 @ w2.T + b2))
    y2_f32 = sine_layer(x2, w2, b2, omega_0=omega_0)
    jax.block_until_ready(y2_f32)
    assert not _LAST_TILE_DEBUG["k_tiled"]
    assert jnp.allclose(y2_f32, ref2, atol=1e-2, rtol=1e-2)

    y2_bf16 = sine_layer(x2, w2, b2, omega_0=omega_0,
                         compute_dtype=jnp.bfloat16, out_dtype=jnp.bfloat16)
    jax.block_until_ready(y2_bf16)
    assert y2_bf16.dtype == jnp.bfloat16
    assert jnp.allclose(y2_bf16.astype(jnp.float32), ref2, atol=8e-2)

    # --- Test 3: force the large-K path (K-tiled with f32 accumulator) via an
    # artificially tiny VMEM budget; 2-D input exercises the rank-2 path. ---
    x3 = jax.random.uniform(k5, (256, 1024), jnp.float32, -1.0, 1.0)
    w3, b3 = init_sine_layer_params(k6, 1024, 256, is_first=False,
                                    omega_0=omega_0)
    ref3 = jnp.sin(omega_0 * (x3 @ w3.T + b3))
    y3 = sine_layer(x3, w3, b3, omega_0=omega_0, vmem_budget_bytes=1_000_000)
    jax.block_until_ready(y3)
    assert _LAST_TILE_DEBUG["k_tiled"]
    assert y3.shape == (256, 256)
    assert jnp.allclose(y3, ref3, atol=3e-2, rtol=0.0)

    print("KERNEL_OK")
</pallas_src>

<mosaic_0001>
module attributes {stable_mosaic.version = 11 : i64} {
  func.func @_sine_kernel(%arg0: i32, %arg1: i32, %arg2: memref<40x32xf32, #tpu.memory_space<vmem>>, %arg3: memref<32x48xf32, #tpu.memory_space<vmem>>, %arg4: memref<1x48xf32, #tpu.memory_space<vmem>>, %arg5: memref<40x48xf32, #tpu.memory_space<vmem>>) attributes {dimension_semantics = [#tpu.dimension_semantics<parallel>, #tpu.dimension_semantics<parallel>], iteration_bounds = array<i64: 1, 2>, scalar_prefetch = 0 : i64, scratch_operands = 0 : i64, tpu.core_type = #tpu.core_type<tc>, window_params = [{transform_indices = @transform_0, window_bounds = array<i64: 40, 32>}, {transform_indices = @transform_1, window_bounds = array<i64: 32, 48>}, {transform_indices = @transform_2, window_bounds = array<i64: 1, 48>}, {transform_indices = @transform_3, window_bounds = array<i64: 40, 48>}]} {
    %c0 = arith.constant 0 : index
    %c0_0 = arith.constant 0 : index
    %0 = vector.load %arg2[%c0, %c0_0] : memref<40x32xf32, #tpu.memory_space<vmem>>, vector<40x32xf32>
    %c0_1 = arith.constant 0 : index
    %c0_2 = arith.constant 0 : index
    %1 = vector.load %arg3[%c0_1, %c0_2] : memref<32x48xf32, #tpu.memory_space<vmem>>, vector<32x48xf32>
    %cst = arith.constant dense<0.000000e+00> : vector<40x48xf32>
    %2 = tpu.matmul %0, %1, %cst {dimension_numbers = #tpu.dot_dimension_numbers<[1], [0], [0], [1], [0, 0, 1, 1], [], []>} : vector<40x32xf32>, vector<32x48xf32>, vector<40x48xf32> -> vector<40x48xf32>
    %c0_3 = arith.constant 0 : index
    %c0_4 = arith.constant 0 : index
    %3 = vector.load %arg4[%c0_3, %c0_4] : memref<1x48xf32, #tpu.memory_space<vmem>>, vector<1x48xf32>
    %4 = vector.broadcast %3 : vector<1x48xf32> to vector<40x48xf32>
    %5 = arith.addf %2, %4 : vector<40x48xf32>
    %cst_5 = arith.constant 3.000000e+01 : f32
    %6 = vector.broadcast %cst_5 : f32 to vector<40x48xf32>
    %7 = arith.mulf %6, %5 : vector<40x48xf32>
    %8 = math.sin %7 : vector<40x48xf32>
    %c0_6 = arith.constant 0 : index
    %c0_7 = arith.constant 0 : index
    %9 = vector.load %arg5[%c0_6, %c0_7] : memref<40x48xf32, #tpu.memory_space<vmem>>, vector<40x48xf32>
    tpu.vector_store %arg5[%c0_6, %c0_7], %8 {strides = array<i32>} : memref<40x48xf32, #tpu.memory_space<vmem>>, vector<40x48xf32>,
    return
  }
  func.func @transform_0(%arg0: i32, %arg1: i32) -> (i32, i32) {
    %c0_i32 = arith.constant 0 : i32
    %c0_i32_0 = arith.constant 0 : i32
    return %arg1, %c0_i32 : i32, i32
  }
  func.func @transform_1(%arg0: i32, %arg1: i32) -> (i32, i32) {
    %c0_i32 = arith.constant 0 : i32
    %c0_i32_0 = arith.constant 0 : i32
    return %c0_i32, %arg0 : i32, i32
  }
  func.func @transform_2(%arg0: i32, %arg1: i32) -> (i32, i32) {
    %c0_i32 = arith.constant 0 : i32
    %c0_i32_0 = arith.constant 0 : i32
    return %c0_i32, %arg0 : i32, i32
  }
  func.func @transform_3(%arg0: i32, %arg1: i32) -> (i32, i32) {
    %c0_i32 = arith.constant 0 : i32
    return %arg1, %arg0 : i32, i32
  }
}

</mosaic_0001>

<llo_original>
// kernel: tpu_custom_call.1
$region0: #{tpu_custom_call.1}
  #allocation0 [shape = 'u32[]', space=smem, size = 0x4, offset = 0x4, fixed_abs, tag = 'smem constant byte address 0x4 - core index']
  #allocation1 [shape = 'u32[144,128]{1,0:T(1,128)}', space=vmem, size = 0x12000, scoped, tag = 'internal scratch']
  %s0 = inlined_call_operand.vmem [shape: f32[74,32], index: 0, kind: input, shape index: {}]
  %s1 = inlined_call_operand.vmem [shape: f32[32,48], index: 1, kind: input, shape index: {}]
  %s2 = inlined_call_operand.vmem [shape: f32[1,48], index: 2, kind: input, shape index: {}]
  %s3 = inlined_call_operand.vmem [shape: f32[74,48], index: 3, kind: output, shape index: {}]
  %s4 = sld [smem:[#allocation0]]
  $region45: #{tpu_custom_call.1} parent=0
    _
  %s6 = ssub.s32 1, %s4
  %s7 = scalar_select 0, %s6, %s4
  loop: start=0, step=1, limit=4
  $region2: #{tpu_custom_call.1} parent=0 // loop_pre_header
    _
  $region3: #{tpu_custom_call.1} parent=0 // loop_header
    %s9 = sphi 0, %s13
    %p10 = scmp.ge.s32.totalorder %s9, 4
    %s16 = sphi 0, %s28
    %s17 = sphi 0, %s24
    %s18 = sphi 0, %s16
    %s19 = sphi 0, %s17
    %s20 = sphi 0, %s18
    %s21 = sphi 0, %s19
    %s31 = sphi 0, %s33
    %s34 = sphi 0, %s31
    %s35 = sphi 0, %s34
    %s51 = sphi 0, %s35
    %s57 = sphi 0, %s59
    %s60 = sphi 0, %s57
    %s61 = sphi 0, %s60
    %s77 = sphi 0, %s61
    %s83 = sphi 0, %s85
    %s86 = sphi 0, %s83
    %s87 = sphi 0, %s86
    %s103 = sphi 0, %s87
    %s111 = sphi 0, %s113
    %s114 = sphi 0, %s111
    %s115 = sphi 0, %s114
    %s131 = sphi 0, %s115
  $region4: #{tpu_custom_call.1} parent=0 // loop_header_branch
    %12 = sbr.rel (%p10) target = $region8
  $region5: #{tpu_custom_call.1} parent=0 // loop_body
    %s14 = ssub.s32 %s9, 1
    %s15 = ssub.s32 %s9, 2
    %s22 = sadd.s32 1, %s17
    %p23 = scmp.ge.s32.totalorder %s22, 2
    %s24 = scalar_select %p23, 0, %s22
    %s25 = sadd.s32 1, %s16
    %s26 = scalar_select %p23, %s25, %s16
    %p27 = scmp.ge.s32.totalorder %s26, 1
    %s28 = scalar_select %p27, 0, %s26
    %s29 = ssub.s32 %s17, %s24
    %p30 = scmp.eq.s32.totalorder %s29, 0
    %s32 = sadd.s32 %s31, 1
    %s33 = scalar_select %p30, %s31, %s32
    %p36 = pneg %p30
    %p37 = scmp.eq.s32.totalorder %s9, 1
    %p38 = por %p36, %p37
    %p39 = scmp.ne.s32.totalorder %s31, %s34
    %p40 = scmp.eq.s32.totalorder %s9, 0
    %p41 = por %p39, %p40
    %p42 = scmp.ne.s32.totalorder %s31, %s34
    %p43 = scmp.eq.s32.totalorder %s14, 1
    %p44 = por %p42, %p43
    %p45 = scmp.ne.s32.totalorder %s34, %s35
    %p46 = scmp.eq.s32.totalorder %s14, 0
    %p47 = por %p45, %p46
    %p48 = scmp.ne.s32.totalorder %s34, %s35
    %p49 = scmp.eq.s32.totalorder %s15, 1
    %p50 = por %p48, %p49
    %p52 = scmp.ne.s32.totalorder %s35, %s51
    %p53 = scmp.eq.s32.totalorder %s15, 0
    %p54 = por %p52, %p53
    %s55 = ssub.s32 %s16, %s28
    %p56 = scmp.eq.s32.totalorder %s55, 0
    %s58 = sadd.s32 %s57, 1
    %s59 = scalar_select %p56, %s57, %s58
    %p62 = pneg %p56
    %p63 = scmp.eq.s32.totalorder %s9, 1
    %p64 = por %p62, %p63
    %p65 = scmp.ne.s32.totalorder %s57, %s60
    %p66 = scmp.eq.s32.totalorder %s9, 0
    %p67 = por %p65, %p66
    %p68 = scmp.ne.s32.totalorder %s57, %s60
    %p69 = scmp.eq.s32.totalorder %s14, 1
    %p70 = por %p68, %p69
    %p71 = scmp.ne.s32.totalorder %s60, %s61
    %p72 = scmp.eq.s32.totalorder %s14, 0
    %p73 = por %p71, %p72
    %p74 = scmp.ne.s32.totalorder %s60, %s61
    %p75 = scmp.eq.s32.totalorder %s15, 1
    %p76 = por %p74, %p75
    %p78 = scmp.ne.s32.totalorder %s61, %s77
    %p79 = scmp.eq.s32.totalorder %s15, 0
    %p80 = por %p78, %p79
    %s81 = ssub.s32 %s16, %s28
    %p82 = scmp.eq.s32.totalorder %s81, 0
    %s84 = sadd.s32 %s83, 1
    %s85 = scalar_select %p82, %s83, %s84
    %p88 = pneg %p82
    %p89 = scmp.eq.s32.totalorder %s9, 1
    %p90 = por %p88, %p89
    %p91 = scmp.ne.s32.totalorder %s83, %s86
    %p92 = scmp.eq.s32.totalorder %s9, 0
    %p93 = por %p91, %p92
    %p94 = scmp.ne.s32.totalorder %s83, %s86
    %p95 = scmp.eq.s32.totalorder %s14, 1
    %p96 = por %p94, %p95
    %p97 = scmp.ne.s32.totalorder %s86, %s87
    %p98 = scmp.eq.s32.totalorder %s14, 0
    %p99 = por %p97, %p98
    %p100 = scmp.ne.s32.totalorder %s86, %s87
    %p101 = scmp.eq.s32.totalorder %s15, 1
    %p102 = por %p100, %p101
    %p104 = scmp.ne.s32.totalorder %s87, %s103
    %p105 = scmp.eq.s32.totalorder %s15, 0
    %p106 = por %p104, %p105
    %s107 = ssub.s32 %s17, %s24
    %s108 = ssub.s32 %s16, %s28
    %s109 = sor.u32 %s107, %s108
    %p110 = scmp.eq.s32.totalorder %s109, 0
    %s112 = sadd.s32 %s111, 1
    %s113 = scalar_select %p110, %s111, %s112
    %p116 = pneg %p110
    %p117 = scmp.eq.s32.totalorder %s9, 1
    %p118 = por %p116, %p117
    %p119 = scmp.ne.s32.totalorder %s111, %s114
    %p120 = scmp.eq.s32.totalorder %s9, 0
    %p121 = por %p119, %p120
    %p122 = scmp.ne.s32.totalorder %s111, %s114
    %p123 = scmp.eq.s32.totalorder %s14, 1
    %p124 = por %p122, %p123
    %p125 = scmp.ne.s32.totalorder %s114, %s115
    %p126 = scmp.eq.s32.totalorder %s14, 0
    %p127 = por %p125, %p126
    %p128 = scmp.ne.s32.totalorder %s114, %s115
    %p129 = scmp.eq.s32.totalorder %s15, 1
    %p130 = por %p128, %p129
    %p132 = scmp.ne.s32.totalorder %s115, %s131
    %p133 = scmp.eq.s32.totalorder %s15, 0
    %p134 = por %p132, %p133
    %p135 = scmp.le.s32.totalorder 1, %s9
    %p136 = scmp.lt.s32.totalorder %s9, 3
    %p137 = pnand %p135, %p136
    %p138 = pneg %p137
    // Predicated region
    $region9: #{tpu_custom_call.1} parent=5 // pred_check
      _
    $region10: #{tpu_custom_call.1} parent=5 // pred_check_branch
      %140 = sbr.rel (%p137) target = $region12
    $region11: #{tpu_custom_call.1} parent=5 // pred_region
      %s141 = ssub.s32 %s9, 1
      // Predicated region
      $region13: #{tpu_custom_call.1} parent=11 // pred_check
        %p142 = pneg %p73
      $region14: #{tpu_custom_call.1} parent=11 // pred_check_branch
        %144 = sbr.rel (%p142) target = $region16
      $region15: #{tpu_custom_call.1} parent=11 // pred_region
        %p145 = scmp.lt.s32.totalorder %s18, 0
        %s146 = scalar_select %p145, %s18, 0
        %s147 = smul.addr %s146, 8
        %s148 = scalar_lea.vmem %s1, %s147
      $region16: #{tpu_custom_call.1} parent=11 // pred_fallthru
        _
      // Predicated region
      $region17: #{tpu_custom_call.1} parent=11 // pred_check
        %p149 = pneg %p99
      $region18: #{tpu_custom_call.1} parent=11 // pred_check_branch
        %151 = sbr.rel (%p149) target = $region20
      $region19: #{tpu_custom_call.1} parent=11 // pred_region
        %p152 = scmp.lt.s32.totalorder %s18, 0
        %s153 = scalar_select %p152, %s18, 0
        %s154 = scalar_lea.vmem %s2, %s153
      $region20: #{tpu_custom_call.1} parent=11 // pred_fallthru
        _
    $region12: #{tpu_custom_call.1} parent=5 // pred_fallthru
      _
    %p155 = scmp.lt.s32.totalorder %s9, 2
    // Predicated region
    $region21: #{tpu_custom_call.1} parent=5 // pred_check
      %p156 = pneg %p155
    $region22: #{tpu_custom_call.1} parent=5 // pred_check_branch
      %158 = sbr.rel (%p156) target = $region24
    $region23: #{tpu_custom_call.1} parent=5 // pred_region
      // Predicated region
      $region25: #{tpu_custom_call.1} parent=23 // pred_check
        %p159 = pneg %p41
      $region26: #{tpu_custom_call.1} parent=23 // pred_check_branch
        %161 = sbr.rel (%p159) target = $region28
      $region27: #{tpu_custom_call.1} parent=23 // pred_region
        %s162 = smul.u32 5, %s17
        %p163 = scmp.lt.s32.totalorder %s162, 9
        %s164 = scalar_select %p163, %s162, 9
        %s165 = smul.addr %s164, 8
        %s166 = scalar_lea.vmem %s0, %s165
        %s167 = smul.u32 5, %s17
      $region28: #{tpu_custom_call.1} parent=23 // pred_fallthru
        _
    $region24: #{tpu_custom_call.1} parent=5 // pred_fallthru
      _
    %p168 = scmp.le.s32.totalorder 1, %s9
    %p169 = scmp.lt.s32.totalorder %s9, 3
    %p170 = pnand %p168, %p169
    %p171 = pneg %p170
    // Predicated region
    $region29: #{tpu_custom_call.1} parent=5 // pred_check
      _
    $region30: #{tpu_custom_call.1} parent=5 // pred_check_branch
      %173 = sbr.rel (%p170) target = $region32
    $region31: #{tpu_custom_call.1} parent=5 // pred_region
      %s174 = ssub.s32 %s9, 1
      %s175 = smul.u32 5, %s19
      %p176 = scmp.lt.s32.totalorder %s175, 9
      %s177 = scalar_select %p176, %s175, 9
      %s178 = smul.addr %s177, 8
      %s179 = scalar_lea.vmem %s0, %s178
      %p180 = pneg %p47
      %p181 = pneg %p44
      %p182 = scmp.lt.s32.totalorder %s18, 0
      %s183 = scalar_select %p182, %s18, 0
      %s184 = smul.addr %s183, 8
      %s185 = scalar_lea.vmem %s1, %s184
      %p186 = pneg %p73
      %p187 = pneg %p70
      %p188 = scmp.lt.s32.totalorder %s18, 0
      %s189 = scalar_select %p188, %s18, 0
      %s190 = scalar_lea.vmem %s2, %s189
      %p191 = pneg %p99
      %p192 = pneg %p96
      %p193 = pneg %p127
      %p194 = pneg %p124
      %s195 = smul.u32 5, %s19
      %p196 = scmp.lt.s32.totalorder %s195, 9
      %s197 = scalar_select %p196, %s195, 9
      %p198 = scmp.lt.s32.totalorder %s18, 0
      %s199 = scalar_select %p198, %s18, 0
      %s200 = sadd.s32 %s199, %s197
      %s201 = smul.addr %s200, 8
      %s202 = scalar_lea.vmem %s3, %s201
      %s203 = smul.u32 5, %s19
      %p204 = scmp.lt.s32.totalorder %s203, 9
      %s205 = scalar_select %p204, %s203, 9
      %s206 = smul.addr %s205, 8
      %s207 = scalar_lea.vmem %s0, %s206
      %s208 = smul.u32 5, %s19
      %p209 = scmp.lt.s32.totalorder %s18, 0
      %s210 = scalar_select %p209, %s18, 0
      %s211 = smul.addr %s210, 8
      %s212 = scalar_lea.vmem %s1, %s211
      %p213 = scmp.lt.s32.totalorder %s18, 0
      %s214 = scalar_select %p213, %s18, 0
      %s215 = scalar_lea.vmem %s2, %s214
      %s216 = smul.u32 5, %s19
      %p217 = scmp.lt.s32.totalorder %s216, 9
      %s218 = scalar_select %p217, %s216, 9
      %p219 = scmp.lt.s32.totalorder %s18, 0
      %s220 = scalar_select %p219, %s18, 0
      %s221 = sadd.s32 %s220, %s218
      %s222 = smul.addr %s221, 8
      %s223 = scalar_lea.vmem %s3, %s222
      %s224 = smul.u32 5, %s19
      %v225 = vld [vmem:[%s207] sm:$0xff]
      %v226 = vld [vmem:[%s207 + $0x8] sm:$0xff]
      %v227 = vld [vmem:[%s207 + $0x10] sm:$0xff]
      %v228 = vld [vmem:[%s207 + $0x18] sm:$0xff]
      %v229 = vld [vmem:[%s207 + $0x20] sm:$0xff]
      %v230 = vld [vmem:[%s212] sm:$0xff]
      %v231 = vld [vmem:[%s212 + $0x8] sm:$0xff]
      %v232 = vld [vmem:[%s212 + $0x10] sm:$0xff]
      %v233 = vld [vmem:[%s212 + $0x18] sm:$0xff]
      %v234 = vld [vmem:[%s215] sm:$0x1]
      %v236 = vlaneseq
      %v237 = vshrl.u32 %v236, 7
      %v238 = vsub.s32 0, %v237
      %v239 = vrot.slane %v234, %v238
      %vm241 = vcmask 261120
      %v243 = vsel %vm241, %v225, 0
      %v246 = vsel %vm241, %v226, 0
      %v249 = vsel %vm241, %v227, 0
      %v252 = vsel %vm241, %v228, 0
      %v255 = vsel %vm241, %v229, 0
      %257 = vmatprep.subr.mxu0 0.0
      %258 = vmatpush1.msra.mxu0 %v230
      %259 = vmatprep.subr.mxu0 0.0
      %260 = vmatpush1.msra.mxu0 %v231
      %261 = vmatprep.subr.mxu0 0.0
      %262 = vmatpush1.msra.mxu0 %v232
      %263 = vmatprep.subr.mxu0 0.0
      %264 = vmatpush1.msra.mxu0 %v233
      %265 = vmatprep.subr.mxu0 0.0
      %266 = vmatpush1.msra.mxu0 0.0
      %267 = vmatprep.subr.mxu0 0.0
      %268 = vmatpush1.msra.mxu0 0.0
      %269 = vmatprep.subr.mxu0 0.0
      %270 = vmatpush1.msra.mxu0 0.0
      %271 = vmatprep.subr.mxu0 0.0
      %272 = vmatpush1.msra.mxu0 0.0
      %273 = vmatprep.subr.mxu0 0.0
      %274 = vmatpush1.msra.mxu0 0.0
      %275 = vmatprep.subr.mxu0 0.0
      %276 = vmatpush1.msra.mxu0 0.0
      %277 = vmatprep.subr.mxu0 0.0
      %278 = vmatpush1.msra.mxu0 0.0
      %279 = vmatprep.subr.mxu0 0.0
      %280 = vmatpush1.msra.mxu0 0.0
      %281 = vmatprep.subr.mxu0 0.0
      %282 = vmatpush1.msra.mxu0 0.0
      %283 = vmatprep.subr.mxu0 0.0
      %284 = vmatpush1.msra.mxu0 0.0
      %285 = vmatprep.subr.mxu0 0.0
      %286 = vmatpush1.msra.mxu0 0.0
      %287 = vmatprep.subr.mxu0 0.0
      %288 = vmatpush1.msra.mxu0 0.0
      %289 = vmatprep.subr.mxu0 0.0
      %290 = vmatpush1.msra.mxu0 0.0
      %291 = vmatprep.subr.mxu0 0.0
      %292 = vmatpush1.msra.mxu0 0.0
      %293 = vmatprep.subr.mxu0 0.0
      %294 = vmatpush1.msra.mxu0 0.0
      %295 = vmatprep.subr.mxu0 0.0
      %296 = vmatpush1.msra.mxu0 0.0
      %297 = vmatprep.subr.mxu0 0.0
      %298 = vmatpush1.msra.mxu0 0.0
      %299 = vmatprep.subr.mxu0 0.0
      %300 = vmatpush1.msra.mxu0 0.0
      %301 = vmatprep.subr.mxu0 0.0
      %302 = vmatpush1.msra.mxu0 0.0
      %303 = vmatprep.subr.mxu0 0.0
      %304 = vmatpush1.msra.mxu0 0.0
      %305 = vmatprep.subr.mxu0 0.0
      %306 = vmatpush1.msra.mxu0 0.0
      %307 = vmatprep.subr.mxu0 0.0
      %308 = vmatpush1.msra.mxu0 0.0
      %309 = vmatprep.subr.mxu0 0.0
      %310 = vmatpush1.msra.mxu0 0.0
      %311 = vmatprep.subr.mxu0 0.0
      %312 = vmatpush1.msra.mxu0 0.0
      %313 = vmatprep.subr.mxu0 0.0
      %314 = vmatpush1.msra.mxu0 0.0
      %315 = vmatprep.subr.mxu0 0.0
      %316 = vmatpush1.msra.mxu0 0.0
      %317 = vmatprep.subr.mxu0 0.0
      %318 = vmatpush1.msra.mxu0 0.0
      %319 = vmatprep.subr.mxu0 0.0
      %320 = vmatpush1.msra.mxu0 0.0
      %321 = vmatprep.mubr.f32.mxu0 0.0
      %322 = vmatmul.mubr.f32.gmra.mrb[0].mxu0 %v243
      %v323 = vpop.f32.mrb[0].mxu0
      %v324 = vadd.f32 %v239, %v323
      %v325 = vpop.f32.mrb[0].mxu0
      %326 = vmatprep.mubr.f32.mxu0 0.0
      %327 = vmatmul.mubr.f32.gmra.mrb[0].mxu0 %v246
      %v328 = vpop.f32.mrb[0].mxu0
      %v329 = vadd.f32 %v239, %v328
      %v330 = vpop.f32.mrb[0].mxu0
      %331 = vmatprep.mubr.f32.mxu0 0.0
      %332 = vmatmul.mubr.f32.gmra.mrb[0].mxu0 %v249
      %v333 = vpop.f32.mrb[0].mxu0
      %v334 = vadd.f32 %v239, %v333
      %v335 = vpop.f32.mrb[0].mxu0
      %336 = vmatprep.mubr.f32.mxu0 0.0
      %337 = vmatmul.mubr.f32.gmra.mrb[0].mxu0 %v252
      %v338 = vpop.f32.mrb[0].mxu0
      %v339 = vadd.f32 %v239, %v338
      %v340 = vpop.f32.mrb[0].mxu0
      %341 = vmatprep.mubr.f32.mxu0 0.0
      %342 = vmatmul.mubr.f32.gmra.mrb[0].mxu0 %v255
      %v343 = vpop.f32.mrb[0].mxu0
      %v344 = vadd.f32 %v239, %v343
      %v345 = vpop.f32.mrb[0].mxu0
      %346 = vdwg.mxu0
      %v347 = vmul.f32 %v324, 30.0
      %v348 = vmul.f32 %v329, 30.0
      %v349 = vmul.f32 %v334, 30.0
      %v350 = vmul.f32 %v339, 30.0
      %v351 = vmul.f32 %v344, 30.0
      %v352 = vand.u32 2147483647, %v347
      %vm353 = vcmp.le.f32.partialorder %v352, 0.7853982
      %vm354 = vcmp.lt.s32.totalorder %v347, 0
      %v355 = vand.u32 %v347, 2139095040
      %v356 = vshrl.u32 %v355, 23
      %v357 = vsub.s32 %v356, 127
      %v358 = vand.u32 2147483647, %v347
      %v359 = vand.u32 %v358, 8388607
      %v360 = vor.u32 %v359, 8388608
      %v361 = vsub.s32 0, %v360
      %v362 = vadd.s32 %v357, 1
      %vm363 = vcmp.gt.s32.totalorder %v362, 0
      %v364 = vsel %vm363, %v362, 0
      %v365 = vshrl.u32 %v364, 5
      %v366 = vand.u32 %v364, 31
      %v367 = vsub.s32 32, %v366
      %v368 = vshrl.u32 683565275, %v367
      %v369 = vshll.u32 683565275, %v366
      %v370 = vshrl.u32 2475754826, %v367
      %v371 = vor.u32 %v369, %v370
      %v372 = vshll.u32 2475754826, %v366
      %v373 = vshrl.u32 2131351028, %v367
      %v374 = vor.u32 %v372, %v373
      %v375 = vshll.u32 2131351028, %v366
      %v376 = vshrl.u32 2102212464, %v367
      %v377 = vor.u32 %v375, %v376
      %v378 = vshll.u32 2102212464, %v366
      %v379 = vshrl.u32 920167782, %v367
      %v380 = vor.u32 %v378, %v379
      %v381 = vshll.u32 920167782, %v366
      %v382 = vshrl.u32 1326507024, %v367
      %v383 = vor.u32 %v381, %v382
      %vm384 = vcmp.lt.s32.totalorder %v365, 1
      %vm385 = vcmp.lt.s32.totalorder %v365, 2
      %vm386 = vcmp.lt.s32.totalorder %v365, 3
      %vm387 = vcmp.lt.s32.totalorder %v365, 4
      %v388 = vsel %vm384, %v368, %v371
      %v389 = vsel %vm387, %v377, 2102212464
      %v390 = vsel %vm386, %v374, %v389
      %v391 = vsel %vm385, %v388, %v390
      %v392 = vsel %vm384, %v371, %v374
      %v393 = vsel %vm387, %v380, 920167782
      %v394 = vsel %vm386, %v377, %v393
      %v395 = vsel %vm385, %v392, %v394
      %v396 = vsel %vm384, %v374, %v377
      %v397 = vsel %vm387, %v383, 1326507024
      %v398 = vsel %vm386, %v380, %v397
      %v399 = vsel %vm385, %v396, %v398
      %v400 = vshll.u32 %v360, 8
      %v401 = vmul.u32.u64.compose %v400, %v399
      %v402 = vextract.low.u32 %v401
      %v403 = vextract.high.u32 %v401
      %v404 = vmul.u32.u64.compose %v400, %v395
      %v405 = vextract.low.u32 %v404
      %v406 = vextract.high.u32 %v404
      %v407 = vmul.u32 %v400, %v391
      %v408 = vadd.s32 %v403, %v405
      %vm409 = vc.u32 %v403, %v405
      %v410 = vadd.s32 %v406, 1
      %v411 = vsel %vm409, %v410, %v406
      %v412 = vadd.s32 %v407, %v411
      %v413 = vadd.s32 %v412, 536870912
      %v414 = vshrl.u32 %v413, 30
      %v415 = vshll.u32 %v414, 30
      %v416 = vsub.s32 %v412, %v415
      %vm417 = vcmp.lt.s32.totalorder %v416, 0
      %v418 = vsub.s32 0, %v416
      %v419 = vsel %vm417, %v418, %v416
      %v420 = vclz %v419
      %v421 = vsub.s32 %v420, 2
      %vm422 = vcmp.gt.s32.totalorder 0, %v421
      %v423 = vsel %vm422, 0, %v421
      %v424 = vsub.s32 32, %v423
      %v425 = vshll.u32 %v416, %v423
      %v426 = vshrl.u32 %v408, %v424
      %v427 = vor.u32 %v425, %v426
      %v428 = vsub.s32 4294967266, %v423
      %v429 = vadd.s32 %v428, 127
      %v430 = vshll.u32 %v429, 23
      %v431 = vor.u32 4788187, %v430
      %v432 = vand.u32 2147483647, %v431
      %v434 = vcvt.s32.f32 %v427
      %v435 = vmul.f32 %v434, %v432
      %v436 = vxor.u32 %v435, 2147483648
      %v437 = vsel %vm354, %v436, %v435
      %v438 = vsub.s32 4, %v414
      %v439 = vsel %vm354, %v438, %v414
      %v440 = vsel %vm353, %v347, %v437
      %v441 = vsel %vm353, 0, %v439
      %v442 = vcosq.f32.pop %v440
      %v443 = vsinq.f32.pop %v440
      %vm444 = vweird.f32 %v347
      %v445 = vadd.s32 %v441, 3
      %v446 = vand.u32 %v445, 3
      %vm447 = vcmp.lt.s32.totalorder %v446, 2
      %vm448 = vcmp.eq.s32.totalorder %v446, 0
      %v449 = vxor.u32 %v443, 2147483648
      %v450 = vsel %vm448, %v442, %v449
      %vm451 = vcmp.eq.s32.totalorder %v446, 2
      %v452 = vxor.u32 %v442, 2147483648
      %v453 = vsel %vm451, %v452, %v443
      %v454 = vsel %vm447, %v450, %v453
      %v455 = vsel %vm444, nan, %v454
      %v456 = vand.u32 2147483647, %v348
      %vm457 = vcmp.le.f32.partialorder %v456, 0.7853982
      %vm458 = vcmp.lt.s32.totalorder %v348, 0
      %v459 = vand.u32 %v348, 2139095040
      %v460 = vshrl.u32 %v459, 23
      %v461 = vsub.s32 %v460, 127
      %v462 = vand.u32 2147483647, %v348
      %v463 = vand.u32 %v462, 8388607
      %v464 = vor.u32 %v463, 8388608
      %v465 = vsub.s32 0, %v464
      %v466 = vadd.s32 %v461, 1
      %vm467 = vcmp.gt.s32.totalorder %v466, 0
      %v468 = vsel %vm467, %v466, 0
      %v469 = vshrl.u32 %v468, 5
      %v470 = vand.u32 %v468, 31
      %v471 = vsub.s32 32, %v470
      %v472 = vshrl.u32 683565275, %v471
      %v473 = vshll.u32 683565275, %v470
      %v474 = vshrl.u32 2475754826, %v471
      %v475 = vor.u32 %v473, %v474
      %v476 = vshll.u32 2475754826, %v470
      %v477 = vshrl.u32 2131351028, %v471
      %v478 = vor.u32 %v476, %v477
      %v479 = vshll.u32 2131351028, %v470
      %v480 = vshrl.u32 2102212464, %v471
      %v481 = vor.u32 %v479, %v480
      %v482 = vshll.u32 2102212464, %v470
      %v483 = vshrl.u32 920167782, %v471
      %v484 = vor.u32 %v482, %v483
      %v485 = vshll.u32 920167782, %v470
      %v486 = vshrl.u32 1326507024, %v471
      %v487 = vor.u32 %v485, %v486
      %vm488 = vcmp.lt.s32.totalorder %v469, 1
      %vm489 = vcmp.lt.s32.totalorder %v469, 2
      %vm490 = vcmp.lt.s32.totalorder %v469, 3
      %vm491 = vcmp.lt.s32.totalorder %v469, 4
      %v492 = vsel %vm488, %v472, %v475
      %v493 = vsel %vm491, %v481, 2102212464
      %v494 = vsel %vm490, %v478, %v493
      %v495 = vsel %vm489, %v492, %v494
      %v496 = vsel %vm488, %v475, %v478
      %v497 = vsel %vm491, %v484, 920167782
      %v498 = vsel %vm490, %v481, %v497
      %v499 = vsel %vm489, %v496, %v498
      %v500 = vsel %vm488, %v478, %v481
      %v501 = vsel %vm491, %v487, 1326507024
      %v502 = vsel %vm490, %v484, %v501
      %v503 = vsel %vm489, %v500, %v502
      %v504 = vshll.u32 %v464, 8
      %v505 = vmul.u32.u64.compose %v504, %v503
      %v506 = vextract.low.u32 %v505
      %v507 = vextract.high.u32 %v505
      %v508 = vmul.u32.u64.compose %v504, %v499
      %v509 = vextract.low.u32 %v508
      %v510 = vextract.high.u32 %v508
      %v511 = vmul.u32 %v504, %v495
      %v512 = vadd.s32 %v507, %v509
      %vm513 = vc.u32 %v507, %v509
      %v514 = vadd.s32 %v510, 1
      %v515 = vsel %vm513, %v514, %v510
      %v516 = vadd.s32 %v511, %v515
      %v517 = vadd.s32 %v516, 536870912
      %v518 = vshrl.u32 %v517, 30
      %v519 = vshll.u32 %v518, 30
      %v520 = vsub.s32 %v516, %v519
      %vm521 = vcmp.lt.s32.totalorder %v520, 0
      %v522 = vsub.s32 0, %v520
      %v523 = vsel %vm521, %v522, %v520
      %v524 = vclz %v523
      %v525 = vsub.s32 %v524, 2
      %vm526 = vcmp.gt.s32.totalorder 0, %v525
      %v527 = vsel %vm526, 0, %v525
      %v528 = vsub.s32 32, %v527
      %v529 = vshll.u32 %v520, %v527
      %v530 = vshrl.u32 %v512, %v528
      %v531 = vor.u32 %v529, %v530
      %v532 = vsub.s32 4294967266, %v527
      %v533 = vadd.s32 %v532, 127
      %v534 = vshll.u32 %v533, 23
      %v535 = vor.u32 4788187, %v534
      %v536 = vand.u32 2147483647, %v535
      %v538 = vcvt.s32.f32 %v531
      %v539 = vmul.f32 %v538, %v536
      %v540 = vxor.u32 %v539, 2147483648
      %v541 = vsel %vm458, %v540, %v539
      %v542 = vsub.s32 4, %v518
      %v543 = vsel %vm458, %v542, %v518
      %v544 = vsel %vm457, %v348, %v541
      %v545 = vsel %vm457, 0, %v543
      %v546 = vcosq.f32.pop %v544
      %v547 = vsinq.f32.pop %v544
      %vm548 = vweird.f32 %v348
      %v549 = vadd.s32 %v545, 3
      %v550 = vand.u32 %v549, 3
      %vm551 = vcmp.lt.s32.totalorder %v550, 2
      %vm552 = vcmp.eq.s32.totalorder %v550, 0
      %v553 = vxor.u32 %v547, 2147483648
      %v554 = vsel %vm552, %v546, %v553
      %vm555 = vcmp.eq.s32.totalorder %v550, 2
      %v556 = vxor.u32 %v546, 2147483648
      %v557 = vsel %vm555, %v556, %v547
      %v558 = vsel %vm551, %v554, %v557
      %v559 = vsel %vm548, nan, %v558
      %v560 = vand.u32 2147483647, %v349
      %vm561 = vcmp.le.f32.partialorder %v560, 0.7853982
      %vm562 = vcmp.lt.s32.totalorder %v349, 0
      %v563 = vand.u32 %v349, 2139095040
      %v564 = vshrl.u32 %v563, 23
      %v565 = vsub.s32 %v564, 127
      %v566 = vand.u32 2147483647, %v349
      %v567 = vand.u32 %v566, 8388607
      %v568 = vor.u32 %v567, 8388608
      %v569 = vsub.s32 0, %v568
      %v570 = vadd.s32 %v565, 1
      %vm571 = vcmp.gt.s32.totalorder %v570, 0
      %v572 = vsel %vm571, %v570, 0
      %v573 = vshrl.u32 %v572, 5
      %v574 = vand.u32 %v572, 31
      %v575 = vsub.s32 32, %v574
      %v576 = vshrl.u32 683565275, %v575
      %v577 = vshll.u32 683565275, %v574
      %v578 = vshrl.u32 2475754826, %v575
      %v579 = vor.u32 %v577, %v578
      %v580 = vshll.u32 2475754826, %v574
      %v581 = vshrl.u32 2131351028, %v575
      %v582 = vor.u32 %v580, %v581
      %v583 = vshll.u32 2131351028, %v574
      %v584 = vshrl.u32 2102212464, %v575
      %v585 = vor.u32 %v583, %v584
      %v586 = vshll.u32 2102212464, %v574
      %v587 = vshrl.u32 920167782, %v575
      %v588 = vor.u32 %v586, %v587
      %v589 = vshll.u32 920167782, %v574
      %v590 = vshrl.u32 1326507024, %v575
      %v591 = vor.u32 %v589, %v590
      %vm592 = vcmp.lt.s32.totalorder %v573, 1
      %vm593 = vcmp.lt.s32.totalorder %v573, 2
      %vm594 = vcmp.lt.s32.totalorder %v573, 3
      %vm595 = vcmp.lt.s32.totalorder %v573, 4
      %v596 = vsel %vm592, %v576, %v579
      %v597 = vsel %vm595, %v585, 2102212464
      %v598 = vsel %vm594, %v582, %v597
      %v599 = vsel %vm593, %v596, %v598
      %v600 = vsel %vm592, %v579, %v582
      %v601 = vsel %vm595, %v588, 920167782
      %v602 = vsel %vm594, %v585, %v601
      %v603 = vsel %vm593, %v600, %v602
      %v604 = vsel %vm592, %v582, %v585
      %v605 = vsel %vm595, %v591, 1326507024
      %v606 = vsel %vm594, %v588, %v605
      %v607 = vsel %vm593, %v604, %v606
      %v608 = vshll.u32 %v568, 8
      %v609 = vmul.u32.u64.compose %v608, %v607
      %v610 = vextract.low.u32 %v609
      %v611 = vextract.high.u32 %v609
      %v612 = vmul.u32.u64.compose %v608, %v603
      %v613 = vextract.low.u32 %v612
      %v614 = vextract.high.u32 %v612
      %v615 = vmul.u32 %v608, %v599
      %v616 = vadd.s32 %v611, %v613
      %vm617 = vc.u32 %v611, %v613
      %v618 = vadd.s32 %v614, 1
      %v619 = vsel %vm617, %v618, %v614
      %v620 = vadd.s32 %v615, %v619
      %v621 = vadd.s32 %v620, 536870912
      %v622 = vshrl.u32 %v621, 30
      %v623 = vshll.u32 %v622, 30
      %v624 = vsub.s32 %v620, %v623
      %vm625 = vcmp.lt.s32.totalorder %v624, 0
      %v626 = vsub.s32 0, %v624
      %v627 = vsel %vm625, %v626, %v624
      %v628 = vclz %v627
      %v629 = vsub.s32 %v628, 2
      %vm630 = vcmp.gt.s32.totalorder 0, %v629
      %v631 = vsel %vm630, 0, %v629
      %v632 = vsub.s32 32, %v631
      %v633 = vshll.u32 %v624, %v631
      %v634 = vshrl.u32 %v616, %v632
      %v635 = vor.u32 %v633, %v634
      %v636 = vsub.s32 4294967266, %v631
      %v637 = vadd.s32 %v636, 127
      %v638 = vshll.u32 %v637, 23
      %v639 = vor.u32 4788187, %v638
      %v640 = vand.u32 2147483647, %v639
      %v642 = vcvt.s32.f32 %v635
      %v643 = vmul.f32 %v642, %v640
      %v644 = vxor.u32 %v643, 2147483648
      %v645 = vsel %vm562, %v644, %v643
      %v646 = vsub.s32 4, %v622
      %v647 = vsel %vm562, %v646, %v622
      %v648 = vsel %vm561, %v349, %v645
      %v649 = vsel %vm561, 0, %v647
      %v650 = vcosq.f32.pop %v648
      %v651 = vsinq.f32.pop %v648
      %vm652 = vweird.f32 %v349
      %v653 = vadd.s32 %v649, 3
      %v654 = vand.u32 %v653, 3
      %vm655 = vcmp.lt.s32.totalorder %v654, 2
      %vm656 = vcmp.eq.s32.totalorder %v654, 0
      %v657 = vxor.u32 %v651, 2147483648
      %v658 = vsel %vm656, %v650, %v657
      %vm659 = vcmp.eq.s32.totalorder %v654, 2
      %v660 = vxor.u32 %v650, 2147483648
      %v661 = vsel %vm659, %v660, %v651
      %v662 = vsel %vm655, %v658, %v661
      %v663 = vsel %vm652, nan, %v662
      %v664 = vand.u32 2147483647, %v350
      %vm665 = vcmp.le.f32.partialorder %v664, 0.7853982
      %vm666 = vcmp.lt.s32.totalorder %v350, 0
      %v667 = vand.u32 %v350, 2139095040
      %v668 = vshrl.u32 %v667, 23
      %v669 = vsub.s32 %v668, 127
      %v670 = vand.u32 2147483647, %v350
      %v671 = vand.u32 %v670, 8388607
      %v672 = vor.u32 %v671, 8388608
      %v673 = vsub.s32 0, %v672
      %v674 = vadd.s32 %v669, 1
      %vm675 = vcmp.gt.s32.totalorder %v674, 0
      %v676 = vsel %vm675, %v674, 0
      %v677 = vshrl.u32 %v676, 5
      %v678 = vand.u32 %v676, 31
      %v679 = vsub.s32 32, %v678
      %v680 = vshrl.u32 683565275, %v679
      %v681 = vshll.u32 683565275, %v678
      %v682 = vshrl.u32 2475754826, %v679
      %v683 = vor.u32 %v681, %v682
      %v684 = vshll.u32 2475754826, %v678
      %v685 = vshrl.u32 2131351028, %v679
      %v686 = vor.u32 %v684, %v685
      %v687 = vshll.u32 2131351028, %v678
      %v688 = vshrl.u32 2102212464, %v679
      %v689 = vor.u32 %v687, %v688
      %v690 = vshll.u32 2102212464, %v678
      %v691 = vshrl.u32 920167782, %v679
      %v692 = vor.u32 %v690, %v691
      %v693 = vshll.u32 920167782, %v678
      %v694 = vshrl.u32 1326507024, %v679
      %v695 = vor.u32 %v693, %v694
      %vm696 = vcmp.lt.s32.totalorder %v677, 1
      %vm697 = vcmp.lt.s32.totalorder %v677, 2
      %vm698 = vcmp.lt.s32.totalorder %v677, 3
      %vm699 = vcmp.lt.s32.totalorder %v677, 4
      %v700 = vsel %vm696, %v680, %v683
      %v701 = vsel %vm699, %v689, 2102212464
      %v702 = vsel %vm698, %v686, %v701
      %v703 = vsel %vm697, %v700, %v702
      %v704 = vsel %vm696, %v683, %v686
      %v705 = vsel %vm699, %v692, 920167782
      %v706 = vsel %vm698, %v689, %v705
      %v707 = vsel %vm697, %v704, %v706
      %v708 = vsel %vm696, %v686, %v689
      %v709 = vsel %vm699, %v695, 1326507024
      %v710 = vsel %vm698, %v692, %v709
      %v711 = vsel %vm697, %v708, %v710
      %v712 = vshll.u32 %v672, 8
      %v713 = vmul.u32.u64.compose %v712, %v711
      %v714 = vextract.low.u32 %v713
      %v715 = vextract.high.u32 %v713
      %v716 = vmul.u32.u64.compose %v712, %v707
      %v717 = vextract.low.u32 %v716
      %v718 = vextract.high.u32 %v716
      %v719 = vmul.u32 %v712, %v703
      %v720 = vadd.s32 %v715, %v717
      %vm721 = vc.u32 %v715, %v717
      %v722 = vadd.s32 %v718, 1
      %v723 = vsel %vm721, %v722, %v718
      %v724 = vadd.s32 %v719, %v723
      %v725 = vadd.s32 %v724, 536870912
      %v726 = vshrl.u32 %v725, 30
      %v727 = vshll.u32 %v726, 30
      %v728 = vsub.s32 %v724, %v727
      %vm729 = vcmp.lt.s32.totalorder %v728, 0
      %v730 = vsub.s32 0, %v728
      %v731 = vsel %vm729, %v730, %v728
      %v732 = vclz %v731
      %v733 = vsub.s32 %v732, 2
      %vm734 = vcmp.gt.s32.totalorder 0, %v733
      %v735 = vsel %vm734, 0, %v733
      %v736 = vsub.s32 32, %v735
      %v737 = vshll.u32 %v728, %v735
      %v738 = vshrl.u32 %v720, %v736
      %v739 = vor.u32 %v737, %v738
      %v740 = vsub.s32 4294967266, %v735
      %v741 = vadd.s32 %v740, 127
      %v742 = vshll.u32 %v741, 23
      %v743 = vor.u32 4788187, %v742
      %v744 = vand.u32 2147483647, %v743
      %v746 = vcvt.s32.f32 %v739
      %v747 = vmul.f32 %v746, %v744
      %v748 = vxor.u32 %v747, 2147483648
      %v749 = vsel %vm666, %v748, %v747
      %v750 = vsub.s32 4, %v726
      %v751 = vsel %vm666, %v750, %v726
      %v752 = vsel %vm665, %v350, %v749
      %v753 = vsel %vm665, 0, %v751
      %v754 = vcosq.f32.pop %v752
      %v755 = vsinq.f32.pop %v752
      %vm756 = vweird.f32 %v350
      %v757 = vadd.s32 %v753, 3
      %v758 = vand.u32 %v757, 3
      %vm759 = vcmp.lt.s32.totalorder %v758, 2
      %vm760 = vcmp.eq.s32.totalorder %v758, 0
      %v761 = vxor.u32 %v755, 2147483648
      %v762 = vsel %vm760, %v754, %v761
      %vm763 = vcmp.eq.s32.totalorder %v758, 2
      %v764 = vxor.u32 %v754, 2147483648
      %v765 = vsel %vm763, %v764, %v755
      %v766 = vsel %vm759, %v762, %v765
      %v767 = vsel %vm756, nan, %v766
      %v768 = vand.u32 2147483647, %v351
      %vm769 = vcmp.le.f32.partialorder %v768, 0.7853982
      %vm770 = vcmp.lt.s32.totalorder %v351, 0
      %v771 = vand.u32 %v351, 2139095040
      %v772 = vshrl.u32 %v771, 23
      %v773 = vsub.s32 %v772, 127
      %v774 = vand.u32 2147483647, %v351
      %v775 = vand.u32 %v774, 8388607
      %v776 = vor.u32 %v775, 8388608
      %v777 = vsub.s32 0, %v776
      %v778 = vadd.s32 %v773, 1
      %vm779 = vcmp.gt.s32.totalorder %v778, 0
      %v780 = vsel %vm779, %v778, 0
      %v781 = vshrl.u32 %v780, 5
      %v782 = vand.u32 %v780, 31
      %v783 = vsub.s32 32, %v782
      %v784 = vshrl.u32 683565275, %v783
      %v785 = vshll.u32 683565275, %v782
      %v786 = vshrl.u32 2475754826, %v783
      %v787 = vor.u32 %v785, %v786
      %v788 = vshll.u32 2475754826, %v782
      %v789 = vshrl.u32 2131351028, %v783
      %v790 = vor.u32 %v788, %v789
      %v791 = vshll.u32 2131351028, %v782
      %v792 = vshrl.u32 2102212464, %v783
      %v793 = vor.u32 %v791, %v792
      %v794 = vshll.u32 2102212464, %v782
      %v795 = vshrl.u32 920167782, %v783
      %v796 = vor.u32 %v794, %v795
      %v797 = vshll.u32 920167782, %v782
      %v798 = vshrl.u32 1326507024, %v783
      %v799 = vor.u32 %v797, %v798
      %vm800 = vcmp.lt.s32.totalorder %v781, 1
      %vm801 = vcmp.lt.s32.totalorder %v781, 2
      %vm802 = vcmp.lt.s32.totalorder %v781, 3
      %vm803 = vcmp.lt.s32.totalorder %v781, 4
      %v804 = vsel %vm800, %v784, %v787
      %v805 = vsel %vm803, %v793, 2102212464
      %v806 = vsel %vm802, %v790, %v805
      %v807 = vsel %vm801, %v804, %v806
      %v808 = vsel %vm800, %v787, %v790
      %v809 = vsel %vm803, %v796, 920167782
      %v810 = vsel %vm802, %v793, %v809
      %v811 = vsel %vm801, %v808, %v810
      %v812 = vsel %vm800, %v790, %v793
      %v813 = vsel %vm803, %v799, 1326507024
      %v814 = vsel %vm802, %v796, %v813
      %v815 = vsel %vm801, %v812, %v814
      %v816 = vshll.u32 %v776, 8
      %v817 = vmul.u32.u64.compose %v816, %v815
      %v818 = vextract.low.u32 %v817
      %v819 = vextract.high.u32 %v817
      %v820 = vmul.u32.u64.compose %v816, %v811
      %v821 = vextract.low.u32 %v820
      %v822 = vextract.high.u32 %v820
      %v823 = vmul.u32 %v816, %v807
      %v824 = vadd.s32 %v819, %v821
      %vm825 = vc.u32 %v819, %v821
      %v826 = vadd.s32 %v822, 1
      %v827 = vsel %vm825, %v826, %v822
      %v828 = vadd.s32 %v823, %v827
      %v829 = vadd.s32 %v828, 536870912
      %v830 = vshrl.u32 %v829, 30
      %v831 = vshll.u32 %v830, 30
      %v832 = vsub.s32 %v828, %v831
      %vm833 = vcmp.lt.s32.totalorder %v832, 0
      %v834 = vsub.s32 0, %v832
      %v835 = vsel %vm833, %v834, %v832
      %v836 = vclz %v835
      %v837 = vsub.s32 %v836, 2
      %vm838 = vcmp.gt.s32.totalorder 0, %v837
      %v839 = vsel %vm838, 0, %v837
      %v840 = vsub.s32 32, %v839
      %v841 = vshll.u32 %v832, %v839
      %v842 = vshrl.u32 %v824, %v840
      %v843 = vor.u32 %v841, %v842
      %v844 = vsub.s32 4294967266, %v839
      %v845 = vadd.s32 %v844, 127
      %v846 = vshll.u32 %v845, 23
      %v847 = vor.u32 4788187, %v846
      %v848 = vand.u32 2147483647, %v847
      %v850 = vcvt.s32.f32 %v843
      %v851 = vmul.f32 %v850, %v848
      %v852 = vxor.u32 %v851, 2147483648
      %v853 = vsel %vm770, %v852, %v851
      %v854 = vsub.s32 4, %v830
      %v855 = vsel %vm770, %v854, %v830
      %v856 = vsel %vm769, %v351, %v853
      %v857 = vsel %vm769, 0, %v855
      %v858 = vcosq.f32.pop %v856
      %v859 = vsinq.f32.pop %v856
      %vm860 = vweird.f32 %v351
      %v861 = vadd.s32 %v857, 3
      %v862 = vand.u32 %v861, 3
      %vm863 = vcmp.lt.s32.totalorder %v862, 2
      %vm864 = vcmp.eq.s32.totalorder %v862, 0
      %v865 = vxor.u32 %v859, 2147483648
      %v866 = vsel %vm864, %v858, %v865
      %vm867 = vcmp.eq.s32.totalorder %v862, 2
      %v868 = vxor.u32 %v858, 2147483648
      %v869 = vsel %vm867, %v868, %v859
      %v870 = vsel %vm863, %v866, %v869
      %v871 = vsel %vm860, nan, %v870
      %vm872 = vcmask 392192
      %873 = vst.msk [vmem:[%s223] sm:$0xff] %vm872, %v455
      %874 = vst.msk [vmem:[%s223 + $0x8] sm:$0xff] %vm872, %v559
      %875 = vst.msk [vmem:[%s223 + $0x10] sm:$0xff] %vm872, %v663
      %876 = vst.msk [vmem:[%s223 + $0x18] sm:$0xff] %vm872, %v767
      %877 = vst.msk [vmem:[%s223 + $0x20] sm:$0xff] %vm872, %v871
      %s878 = smul.u32 5, %s19
      %p879 = scmp.lt.s32.totalorder %s878, 9
      %s880 = scalar_select %p879, %s878, 9
      %p881 = scmp.lt.s32.totalorder %s18, 0
      %s882 = scalar_select %p881, %s18, 0
      %s883 = sadd.s32 %s882, %s880
      %s884 = smul.addr %s883, 8
      %s885 = scalar_lea.vmem %s3, %s884
      // Predicated region
      $region33: #{tpu_custom_call.1} parent=31 // pred_check
        %p886 = pneg %p124
      $region34: #{tpu_custom_call.1} parent=31 // pred_check_branch
        %888 = sbr.rel (%p886) target = $region36
      $region35: #{tpu_custom_call.1} parent=31 // pred_region
        %s889 = smul.u32 5, %s19
      $region36: #{tpu_custom_call.1} parent=31 // pred_fallthru
        _
    $region32: #{tpu_custom_call.1} parent=5 // pred_fallthru
      _
    %p890 = scmp.le.s32.totalorder 2, %s9
    // Predicated region
    $region37: #{tpu_custom_call.1} parent=5 // pred_check
      %p891 = pneg %p890
    $region38: #{tpu_custom_call.1} parent=5 // pred_check_branch
      %893 = sbr.rel (%p891) target = $region40
    $region39: #{tpu_custom_call.1} parent=5 // pred_region
      %s894 = ssub.s32 %s9, 2
      // Predicated region
      $region41: #{tpu_custom_call.1} parent=39 // pred_check
        %p895 = pneg %p130
      $region42: #{tpu_custom_call.1} parent=39 // pred_check_branch
        %897 = sbr.rel (%p895) target = $region44
      $region43: #{tpu_custom_call.1} parent=39 // pred_region
        %s898 = smul.u32 5, %s21
        %p899 = scmp.lt.s32.totalorder %s898, 9
        %s900 = scalar_select %p899, %s898, 9
        %p901 = scmp.lt.s32.totalorder %s20, 0
        %s902 = scalar_select %p901, %s20, 0
        %s903 = sadd.s32 %s902, %s900
        %s904 = smul.addr %s903, 8
        %s905 = scalar_lea.vmem %s3, %s904
      $region44: #{tpu_custom_call.1} parent=39 // pred_fallthru
        _
    $region40: #{tpu_custom_call.1} parent=5 // pred_fallthru
      _
  $region6: #{tpu_custom_call.1} parent=0 // loop_footer
    %s13 = sadd.s32 1, %s9
  $region7: #{tpu_custom_call.1} parent=0 // loop_footer_branch
    %8 = sbr.rel target = $region3
  $region8: #{tpu_custom_call.1} parent=0 // loop_exit
    _

</llo_original>
